<compile_context>
chip_gen: v6e
topology: v6e:2x2x1
jax: 0.10.0
libtpu: 0.0.40
codegen_flags: <defaults>
</compile_context>

<pallas_src>
import math
import jax
import jax.numpy as jnp
from jax.experimental import pallas as pl
from jax.experimental.pallas import tpu as pltpu


def _round_up(x, m):
    return ((x + m - 1) // m) * m


def _decoder_kernel(x_ref, w1_ref, b1_ref, we_ref, be_ref, out_ref):
    # x_ref: (C, TE) = gathered z[src]*z[dst] features for this edge tile,
    # transposed layout (features on sublanes, edges on lanes).
    h = jnp.dot(w1_ref[...], x_ref[...],
                preferred_element_type=jnp.float32) + b1_ref[...]
    # nn.Dropout(p=0.2) -> identity in eval mode.
    h = jnp.where(h > 0, h, jnp.float32(0.01) * h)          # LeakyReLU(0.01)
    # Fused Linear2∘Linear3, both heads: (2, 2H) @ (2H, TE) + (2, 1)
    # row 0 = param_1, row 1 = param_2.
    o = jnp.dot(we_ref[...], h,
                preferred_element_type=jnp.float32) + be_ref[...]
    out_ref[...] = o.astype(out_ref.dtype)


def pack_decoder_params(params):
    """One-time packing of the two MLP heads into the fused/transposed form."""
    H = params["w11"].shape[1]
    # Layer 1, both heads stacked: (2H, C), (2H, 1).
    w1t = jnp.concatenate([params["w11"], params["w21"]], axis=1).T
    b1t = jnp.concatenate([params["b11"], params["b21"]], axis=1).T
    # Algebraic fusion of Linear(H,H) ∘ Linear(H,1) per head (no activation in
    # between; Dropout is identity in eval):
    #   (h @ w2 + b2) @ w3 + b3 == h @ (w2 @ w3) + (b2 @ w3 + b3)
    v1 = params["w12"] @ params["w13"]                       # (H, 1)
    v2 = params["w22"] @ params["w23"]                       # (H, 1)
    c1 = params["b12"] @ params["w13"] + params["b13"]       # (1, 1)
    c2 = params["b22"] @ params["w23"] + params["b23"]       # (1, 1)
    w_eff = jnp.zeros((2, 2 * H), jnp.float32)
    w_eff = w_eff.at[0, :H].set(v1[:, 0]).at[1, H:].set(v2[:, 0])   # (2, 2H)
    b_eff = jnp.concatenate([c1, c2], axis=0)                        # (2, 1)
    return {"w1t": w1t, "b1t": b1t, "w_eff": w_eff, "b_eff": b_eff}


def variational_mlp_decoder(z, edge_index, packed, latent_distrib="ks",
                            te=8192):
    """Returns the two distribution-parameter tensors (each shape (E,))."""
    N, C = z.shape
    H2 = packed["w1t"].shape[0]                              # 2*H
    E = edge_index.shape[1]

    # ---- tiling: pad edges only to a multiple of 128; cdiv (ragged) grid ----
    E_pad = _round_up(E, 128)
    te_eff = max(128, (min(te, E_pad) // 128) * 128)
    if E_pad >= 256:
        # Keep >= 2 grid steps so v7x's two TensorCores both get work
        # (harmless on single-TC v5e/v6e).
        te_eff = min(te_eff, _round_up((E_pad + 1) // 2, 128))
    grid = pl.cdiv(E_pad, te_eff)

    # ---- gather + feature product fused in XLA, already in (C, E) layout ----
    ei = edge_index
    if E_pad != E:
        ei = jnp.pad(edge_index, ((0, 0), (0, E_pad - E)))   # dummy node 0
    z_t = jnp.transpose(z)                                   # (C, N)
    x_t = (jnp.take(z_t, ei[0], axis=1) *
           jnp.take(z_t, ei[1], axis=1))                     # (C, E_pad)
    # TODO(synk): on v5e/v6e (128 MiB VMEM) the gather could move inside the
    # kernel (z resident in VMEM + per-tile edge indices), eliminating the
    # (C, E_pad) HBM round trip; kept in XLA here so the same kernel stays
    # within v7x's 64 MiB and avoids lane-axis-gather lowering risk.

    edge_spec = pl.BlockSpec((C, te_eff), lambda i: (0, i))
    const = lambda shape: pl.BlockSpec(shape, lambda i: (0, 0))   # grid-invariant

    # Bump scoped VMEM only when the tile needs it (v5e default is 16 MiB).
    tile_bytes = 4 * te_eff * (2 * C + 4 + 2 * H2)           # conservative
    vmem_limit = None
    if tile_bytes > 8 * 1024 * 1024:
        vmem_limit = min(4 * tile_bytes, 96 * 1024 * 1024)

    out = pl.pallas_call(
        _decoder_kernel,
        out_shape=jax.ShapeDtypeStruct((2, E_pad), jnp.float32),
        grid_spec=pltpu.PrefetchScalarGridSpec(
            num_scalar_prefetch=0,
            grid=(grid,),
            in_specs=[
                edge_spec,
                const((H2, C)), const((H2, 1)),
                const((2, H2)), const((2, 1)),
            ],
            out_specs=pl.BlockSpec((2, te_eff), lambda i: (0, i)),
        ),
        compiler_params=pltpu.CompilerParams(
            dimension_semantics=("parallel",),
            vmem_limit_bytes=vmem_limit),
    )(x_t, packed["w1t"], packed["b1t"], packed["w_eff"], packed["b_eff"])

    param_1 = out[0, :E]                                     # .squeeze() -> (E,)
    param_2 = out[1, :E]

    if latent_distrib == "ks":
        return param_1, param_2                              # (log_a, log_b)
    elif latent_distrib == "beta":
        a = jax.nn.softplus(param_1) + 1e-06
        b = jax.nn.softplus(param_2) + 1e-06
        return a, b
    elif latent_distrib == "tanh-normal":
        return param_1, param_2                              # (mu, log_stdv)
    else:
        raise ValueError(f"Invalid latent distribution: {latent_distrib}")


def _init_params(key, in_channels, hidden_channels):
    """Deterministic init matching nn.Linear shapes; weights stored as (in, out)."""
    ks = jax.random.split(key, 12)

    def linear(kw, kb, fan_in, fan_out):
        bound = 1.0 / math.sqrt(fan_in)
        w = jax.random.uniform(kw, (fan_in, fan_out), jnp.float32, -bound, bound)
        b = jax.random.uniform(kb, (1, fan_out), jnp.float32, -bound, bound)
        return w, b

    p = {}
    p["w11"], p["b11"] = linear(ks[0], ks[1], in_channels, hidden_channels)
    p["w12"], p["b12"] = linear(ks[2], ks[3], hidden_channels, hidden_channels)
    p["w13"], p["b13"] = linear(ks[4], ks[5], hidden_channels, 1)
    p["w21"], p["b21"] = linear(ks[6], ks[7], in_channels, hidden_channels)
    p["w22"], p["b22"] = linear(ks[8], ks[9], hidden_channels, hidden_channels)
    p["w23"], p["b23"] = linear(ks[10], ks[11], hidden_channels, 1)
    return p


def _reference(z, edge_index, params):
    x = z[edge_index[0]] * z[edge_index[1]]

    def mlp(pfx):
        h = x @ params[f"w{pfx}1"] + params[f"b{pfx}1"]
        h = jnp.where(h > 0, h, 0.01 * h)
        h = h @ params[f"w{pfx}2"] + params[f"b{pfx}2"]
        o = h @ params[f"w{pfx}3"] + params[f"b{pfx}3"]
        return o.squeeze(-1)

    return mlp("1"), mlp("2")


if __name__ == "__main__":
    key = jax.random.PRNGKey(0)
    k_z, k_e, k_p = jax.random.split(key, 3)

    N, C, H, E = 16, 8, 32, 10
    z = jax.random.normal(k_z, (N, C), jnp.float32)
    edge_index = jax.random.randint(k_e, (2, E), 0, N, jnp.int32)
    params = _init_params(k_p, C, H)
    packed = pack_decoder_params(params)        # hoisted: packed once per param set

    fwd = jax.jit(variational_mlp_decoder,
                  static_argnames=("latent_distrib", "te"))

    # Case 1: tiny graph, single tile.
    log_a, log_b = fwd(z, edge_index, packed, latent_distrib="ks", te=8192)
    jax.block_until_ready((log_a, log_b))
    ref_a, ref_b = _reference(z, edge_index, params)
    assert log_a.shape == (E,) and log_b.shape == (E,)
    assert jnp.allclose(log_a, ref_a, atol=1e-4, rtol=1e-4)
    assert jnp.allclose(log_b, ref_b, atol=1e-4, rtol=1e-4)

    # Case 2: multi-tile grid with a ragged (cdiv) last block (E=300 -> pad 384,
    # te capped to 256 for the 2-step/v7x rule -> last block is partial).
    k_z2, k_e2 = jax.random.split(k_e)
    N2, E2 = 64, 300
    z2 = jax.random.normal(k_z2, (N2, C), jnp.float32)
    ei2 = jax.random.randint(k_e2, (2, E2), 0, N2, jnp.int32)
    a2, b2 = fwd(z2, ei2, packed, latent_distrib="ks", te=8192)
    jax.block_until_ready((a2, b2))
    ra2, rb2 = _reference(z2, ei2, params)
    assert jnp.allclose(a2, ra2, atol=1e-4, rtol=1e-4)
    assert jnp.allclose(b2, rb2, atol=1e-4, rtol=1e-4)

    # Case 3: explicit small tile -> several full grid steps.
    k_z3, k_e3 = jax.random.split(k_e2)
    E3 = 700
    z3 = jax.random.normal(k_z3, (N2, C), jnp.float32)
    ei3 = jax.random.randint(k_e3, (2, E3), 0, N2, jnp.int32)
    a3, b3 = fwd(z3, ei3, packed, latent_distrib="ks", te=256)
    jax.block_until_ready((a3, b3))
    ra3, rb3 = _reference(z3, ei3, params)
    assert jnp.allclose(a3, ra3, atol=1e-4, rtol=1e-4)
    assert jnp.allclose(b3, rb3, atol=1e-4, rtol=1e-4)

    print("KERNEL_OK")
</pallas_src>

<mosaic_0001>
module attributes {stable_mosaic.version = 11 : i64} {
  func.func @_decoder_kernel(%arg0: i32, %arg1: memref<8x128xf32, #tpu.memory_space<vmem>>, %arg2: memref<64x8xf32, #tpu.memory_space<vmem>>, %arg3: memref<64x1xf32, #tpu.memory_space<vmem>>, %arg4: memref<2x64xf32, #tpu.memory_space<vmem>>, %arg5: memref<2x1xf32, #tpu.memory_space<vmem>>, %arg6: memref<2x128xf32, #tpu.memory_space<vmem>>) attributes {dimension_semantics = [#tpu.dimension_semantics<parallel>], iteration_bounds = array<i64: 1>, scalar_prefetch = 0 : i64, scratch_operands = 0 : i64, tpu.core_type = #tpu.core_type<tc>, window_params = [{transform_indices = @transform_0, window_bounds = array<i64: 8, 128>}, {pipeline_mode = #tpu.pipeline_mode<synchronous>, transform_indices = @transform_1, window_bounds = array<i64: 64, 8>}, {pipeline_mode = #tpu.pipeline_mode<synchronous>, transform_indices = @transform_2, window_bounds = array<i64: 64, 1>}, {pipeline_mode = #tpu.pipeline_mode<synchronous>, transform_indices = @transform_3, window_bounds = array<i64: 2, 64>}, {pipeline_mode = #tpu.pipeline_mode<synchronous>, transform_indices = @transform_4, window_bounds = array<i64: 2, 1>}, {transform_indices = @transform_5, window_bounds = array<i64: 2, 128>}]} {
    %c0 = arith.constant 0 : index
    %c0_0 = arith.constant 0 : index
    %0 = vector.load %arg2[%c0, %c0_0] : memref<64x8xf32, #tpu.memory_space<vmem>>, vector<64x8xf32>
    %c0_1 = arith.constant 0 : index
    %c0_2 = arith.constant 0 : index
    %1 = vector.load %arg1[%c0_1, %c0_2] : memref<8x128xf32, #tpu.memory_space<vmem>>, vector<8x128xf32>
    %cst = arith.constant dense<0.000000e+00> : vector<64x128xf32>
    %2 = tpu.matmul %0, %1, %cst {dimension_numbers = #tpu.dot_dimension_numbers<[1], [0], [0], [1], [0, 0, 1, 1], [], []>} : vector<64x8xf32>, vector<8x128xf32>, vector<64x128xf32> -> vector<64x128xf32>
    %c0_3 = arith.constant 0 : index
    %c0_4 = arith.constant 0 : index
    %3 = vector.load %arg3[%c0_3, %c0_4] : memref<64x1xf32, #tpu.memory_space<vmem>>, vector<64x1xf32>
    %4 = vector.broadcast %3 : vector<64x1xf32> to vector<64x128xf32>
    %5 = arith.addf %2, %4 : vector<64x128xf32>
    %cst_5 = arith.constant 0.000000e+00 : f32
    %6 = vector.broadcast %cst_5 : f32 to vector<64x128xf32>
    %7 = arith.cmpf ogt, %5, %6 : vector<64x128xf32>
    %cst_6 = arith.constant 0.00999999977 : f32
    %8 = vector.broadcast %cst_6 : f32 to vector<64x128xf32>
    %9 = arith.mulf %8, %5 : vector<64x128xf32>
    %10 = arith.select %7, %5, %9 : vector<64x128xi1>, vector<64x128xf32>
    %c0_7 = arith.constant 0 : index
    %c0_8 = arith.constant 0 : index
    %11 = vector.load %arg4[%c0_7, %c0_8] : memref<2x64xf32, #tpu.memory_space<vmem>>, vector<2x64xf32>
    %cst_9 = arith.constant dense<0.000000e+00> : vector<2x128xf32>
    %12 = tpu.matmul %11, %10, %cst_9 {dimension_numbers = #tpu.dot_dimension_numbers<[1], [0], [0], [1], [0, 0, 1, 1], [], []>} : vector<2x64xf32>, vector<64x128xf32>, vector<2x128xf32> -> vector<2x128xf32>
    %c0_10 = arith.constant 0 : index
    %c0_11 = arith.constant 0 : index
    %13 = vector.load %arg5[%c0_10, %c0_11] : memref<2x1xf32, #tpu.memory_space<vmem>>, vector<2x1xf32>
    %14 = vector.broadcast %13 : vector<2x1xf32> to vector<2x128xf32>
    %15 = arith.addf %12, %14 : vector<2x128xf32>
    %c0_12 = arith.constant 0 : index
    %c0_13 = arith.constant 0 : index
    %16 = vector.load %arg6[%c0_12, %c0_13] : memref<2x128xf32, #tpu.memory_space<vmem>>, vector<2x128xf32>
    tpu.vector_store %arg6[%c0_12, %c0_13], %15 {strides = array<i32>} : memref<2x128xf32, #tpu.memory_space<vmem>>, vector<2x128xf32>,
    return
  }
  func.func @transform_0(%arg0: i32) -> (i32, i32) {
    %c0_i32 = arith.constant 0 : i32
    %c0_i32_0 = arith.constant 0 : i32
    return %c0_i32, %arg0 : i32, i32
  }
  func.func @transform_1(%arg0: i32) -> (i32, i32) {
    %c0_i32 = arith.constant 0 : i32
    %c0_i32_0 = arith.constant 0 : i32
    %c0_i32_1 = arith.constant 0 : i32
    return %c0_i32, %c0_i32_0 : i32, i32
  }
  func.func @transform_2(%arg0: i32) -> (i32, i32) {
    %c0_i32 = arith.constant 0 : i32
    %c0_i32_0 = arith.constant 0 : i32
    %c0_i32_1 = arith.constant 0 : i32
    return %c0_i32, %c0_i32_0 : i32, i32
  }
  func.func @transform_3(%arg0: i32) -> (i32, i32) {
    %c0_i32 = arith.constant 0 : i32
    %c0_i32_0 = arith.constant 0 : i32
    %c0_i32_1 = arith.constant 0 : i32
    return %c0_i32, %c0_i32_0 : i32, i32
  }
  func.func @transform_4(%arg0: i32) -> (i32, i32) {
    %c0_i32 = arith.constant 0 : i32
    %c0_i32_0 = arith.constant 0 : i32
    %c0_i32_1 = arith.constant 0 : i32
    return %c0_i32, %c0_i32_0 : i32, i32
  }
  func.func @transform_5(%arg0: i32) -> (i32, i32) {
    %c0_i32 = arith.constant 0 : i32
    %c0_i32_0 = arith.constant 0 : i32
    return %c0_i32, %arg0 : i32, i32
  }
}

</mosaic_0001>

<llo_original>
// kernel: variational_mlp_decoder.1
$region0: #{variational_mlp_decoder.1}
  #allocation0 [shape = 'u32[]', space=smem, size = 0x4, offset = 0x4, fixed_abs, tag = 'smem constant byte address 0x4 - core index']
  #allocation1 [shape = 'u32[144,128]{1,0:T(1,128)}', space=vmem, size = 0x12000, scoped, tag = 'internal scratch']
  %s0 = inlined_call_operand.vmem [shape: f32[8,128], index: 0, kind: input, shape index: {}]
  %s1 = inlined_call_operand.vmem [shape: f32[64,8], index: 1, kind: input, shape index: {}]
  %s2 = inlined_call_operand.vmem [shape: f32[64,1], index: 2, kind: input, shape index: {}]
  %s3 = inlined_call_operand.vmem [shape: f32[2,64], index: 3, kind: input, shape index: {}]
  %s4 = inlined_call_operand.vmem [shape: f32[2,1], index: 4, kind: input, shape index: {}]
  %s5 = inlined_call_operand.vmem [shape: f32[2,128], index: 5, kind: output, shape index: {}]
  %s6 = sld [smem:[#allocation0]]
  $region30: #{variational_mlp_decoder.1} parent=0
    _
  %s8 = ssub.s32 1, %s6
  %s9 = scalar_select 0, %s8, %s6
  // Predicated region
  $region2: #{variational_mlp_decoder.1} parent=0 // pred_check
    _
  $region3: #{variational_mlp_decoder.1} parent=0 // pred_check_branch
    %11 = sbr.rel (0) target = $region5
  $region4: #{variational_mlp_decoder.1} parent=0 // pred_region
    _
  $region5: #{variational_mlp_decoder.1} parent=0 // pred_fallthru
    _
  // Predicated region
  $region6: #{variational_mlp_decoder.1} parent=0 // pred_check
    _
  $region7: #{variational_mlp_decoder.1} parent=0 // pred_check_branch
    %13 = sbr.rel (0) target = $region9
  $region8: #{variational_mlp_decoder.1} parent=0 // pred_region
    _
  $region9: #{variational_mlp_decoder.1} parent=0 // pred_fallthru
    _
  // Predicated region
  $region10: #{variational_mlp_decoder.1} parent=0 // pred_check
    _
  $region11: #{variational_mlp_decoder.1} parent=0 // pred_check_branch
    %15 = sbr.rel (0) target = $region13
  $region12: #{variational_mlp_decoder.1} parent=0 // pred_region
    _
  $region13: #{variational_mlp_decoder.1} parent=0 // pred_fallthru
    _
  // Predicated region
  $region14: #{variational_mlp_decoder.1} parent=0 // pred_check
    _
  $region15: #{variational_mlp_decoder.1} parent=0 // pred_check_branch
    %17 = sbr.rel (0) target = $region17
  $region16: #{variational_mlp_decoder.1} parent=0 // pred_region
    _
  $region17: #{variational_mlp_decoder.1} parent=0 // pred_fallthru
    _
  // Predicated region
  $region18: #{variational_mlp_decoder.1} parent=0 // pred_check
    _
  $region19: #{variational_mlp_decoder.1} parent=0 // pred_check_branch
    %19 = sbr.rel (0) target = $region21
  $region20: #{variational_mlp_decoder.1} parent=0 // pred_region
    _
  $region21: #{variational_mlp_decoder.1} parent=0 // pred_fallthru
    _
  %v20 = vld [vmem:[%s1] sm:$0xff]
  %v21 = vld [vmem:[%s1 + $0x8] sm:$0xff]
  %v22 = vld [vmem:[%s1 + $0x10] sm:$0xff]
  %v23 = vld [vmem:[%s1 + $0x18] sm:$0xff]
  %v24 = vld [vmem:[%s1 + $0x20] sm:$0xff]
  %v25 = vld [vmem:[%s1 + $0x28] sm:$0xff]
  %v26 = vld [vmem:[%s1 + $0x30] sm:$0xff]
  %v27 = vld [vmem:[%s1 + $0x38] sm:$0xff]
  %v28 = vld [vmem:[%s0] sm:$0xff]
  %v29 = vld [vmem:[%s2] sm:$0xff]
  %v30 = vld [vmem:[%s2 + $0x8] sm:$0xff]
  %v31 = vld [vmem:[%s2 + $0x10] sm:$0xff]
  %v32 = vld [vmem:[%s2 + $0x18] sm:$0xff]
  %v33 = vld [vmem:[%s2 + $0x20] sm:$0xff]
  %v34 = vld [vmem:[%s2 + $0x28] sm:$0xff]
  %v35 = vld [vmem:[%s2 + $0x30] sm:$0xff]
  %v36 = vld [vmem:[%s2 + $0x38] sm:$0xff]
  %38 = vset.pattern.permute.xlu0 0
  %39 = vperm.xlu0 %38, %v29
  %v40 = vpop.permute.xlu0 %39
  %43 = vset.pattern.permute.xlu0 0
  %44 = vperm.xlu0 %43, %v30
  %v45 = vpop.permute.xlu0 %44
  %48 = vset.pattern.permute.xlu0 0
  %49 = vperm.xlu0 %48, %v31
  %v50 = vpop.permute.xlu0 %49
  %53 = vset.pattern.permute.xlu0 0
  %54 = vperm.xlu0 %53, %v32
  %v55 = vpop.permute.xlu0 %54
  %58 = vset.pattern.permute.xlu0 0
  %59 = vperm.xlu0 %58, %v33
  %v60 = vpop.permute.xlu0 %59
  %63 = vset.pattern.permute.xlu0 0
  %64 = vperm.xlu0 %63, %v34
  %v65 = vpop.permute.xlu0 %64
  %68 = vset.pattern.permute.xlu0 0
  %69 = vperm.xlu0 %68, %v35
  %v70 = vpop.permute.xlu0 %69
  %73 = vset.pattern.permute.xlu0 0
  %74 = vperm.xlu0 %73, %v36
  %v75 = vpop.permute.xlu0 %74
  %vm77 = vcmask 64512
  %v79 = vsel %vm77, %v20, 0
  %v82 = vsel %vm77, %v21, 0
  %v85 = vsel %vm77, %v22, 0
  %v88 = vsel %vm77, %v23, 0
  %v91 = vsel %vm77, %v24, 0
  %v94 = vsel %vm77, %v25, 0
  %v97 = vsel %vm77, %v26, 0
  %v100 = vsel %vm77, %v27, 0
  %102 = vmatprep.subr.mxu0 0.0
  %103 = vmatpush1.msra.mxu0 0.0
  %104 = vmatprep.subr.mxu0 0.0
  %105 = vmatpush1.msra.mxu0 0.0
  %106 = vmatprep.subr.mxu0 0.0
  %107 = vmatpush1.msra.mxu0 0.0
  %108 = vmatprep.subr.mxu0 0.0
  %109 = vmatpush1.msra.mxu0 0.0
  %110 = vmatprep.subr.mxu0 0.0
  %111 = vmatpush1.msra.mxu0 0.0
  %112 = vmatprep.subr.mxu0 0.0
  %113 = vmatpush1.msra.mxu0 0.0
  %114 = vmatprep.subr.mxu0 0.0
  %115 = vmatpush1.msra.mxu0 0.0
  %116 = vmatprep.subr.mxu0 0.0
  %117 = vmatpush1.msra.mxu0 0.0
  %118 = vmatprep.subr.mxu0 0.0
  %119 = vmatpush1.msra.mxu0 0.0
  %120 = vmatprep.subr.mxu0 0.0
  %121 = vmatpush1.msra.mxu0 0.0
  %122 = vmatprep.subr.mxu0 0.0
  %123 = vmatpush1.msra.mxu0 0.0
  %124 = vmatprep.subr.mxu0 0.0
  %125 = vmatpush1.msra.mxu0 0.0
  %126 = vmatprep.subr.mxu0 0.0
  %127 = vmatpush1.msra.mxu0 0.0
  %128 = vmatprep.subr.mxu0 0.0
  %129 = vmatpush1.msra.mxu0 0.0
  %130 = vmatprep.subr.mxu0 0.0
  %131 = vmatpush1.msra.mxu0 0.0
  %132 = vmatprep.subr.mxu0 0.0
  %133 = vmatpush1.msra.mxu0 %v28
  %134 = vmatprep.subr.mxu0 0.0
  %135 = vmatpush2.msra.mxu0 0.0
  %136 = vmatprep.subr.mxu0 0.0
  %137 = vmatpush2.msra.mxu0 0.0
  %138 = vmatprep.subr.mxu0 0.0
  %139 = vmatpush2.msra.mxu0 0.0
  %140 = vmatprep.subr.mxu0 0.0
  %141 = vmatpush2.msra.mxu0 0.0
  %142 = vmatprep.subr.mxu0 0.0
  %143 = vmatpush2.msra.mxu0 0.0
  %144 = vmatprep.subr.mxu0 0.0
  %145 = vmatpush2.msra.mxu0 0.0
  %146 = vmatprep.subr.mxu0 0.0
  %147 = vmatpush2.msra.mxu0 0.0
  %148 = vmatprep.subr.mxu0 0.0
  %149 = vmatpush2.msra.mxu0 0.0
  %150 = vmatprep.subr.mxu0 0.0
  %151 = vmatpush2.msra.mxu0 0.0
  %152 = vmatprep.subr.mxu0 0.0
  %153 = vmatpush2.msra.mxu0 0.0
  %154 = vmatprep.subr.mxu0 0.0
  %155 = vmatpush2.msra.mxu0 0.0
  %156 = vmatprep.subr.mxu0 0.0
  %157 = vmatpush2.msra.mxu0 0.0
  %158 = vmatprep.subr.mxu0 0.0
  %159 = vmatpush2.msra.mxu0 0.0
  %160 = vmatprep.subr.mxu0 0.0
  %161 = vmatpush2.msra.mxu0 0.0
  %162 = vmatprep.subr.mxu0 0.0
  %163 = vmatpush2.msra.mxu0 0.0
  %164 = vmatprep.subr.mxu0 0.0
  %165 = vmatpush2.msra.mxu0 0.0
  %166 = vmatprep.mubr.f32.mxu0 0.0
  %167 = vmatmul.mubr.f32.gmra.mxu0 %v79
  %v168 = vpop.f32.mrf.mxu0
  %v169 = vadd.f32 %v40, %v168
  %v170 = vpop.f32.mrf.mxu0
  %171 = vmatprep.mubr.f32.mxu0 0.0
  %172 = vmatmul.mubr.f32.gmra.mxu0 %v82
  %v173 = vpop.f32.mrf.mxu0
  %v174 = vadd.f32 %v45, %v173
  %v175 = vpop.f32.mrf.mxu0
  %176 = vmatprep.mubr.f32.mxu0 0.0
  %177 = vmatmul.mubr.f32.gmra.mxu0 %v85
  %v178 = vpop.f32.mrf.mxu0
  %v179 = vadd.f32 %v50, %v178
  %v180 = vpop.f32.mrf.mxu0
  %181 = vmatprep.mubr.f32.mxu0 0.0
  %182 = vmatmul.mubr.f32.gmra.mxu0 %v88
  %v183 = vpop.f32.mrf.mxu0
  %v184 = vadd.f32 %v55, %v183
  %v185 = vpop.f32.mrf.mxu0
  %186 = vmatprep.mubr.f32.mxu0 0.0
  %187 = vmatmul.mubr.f32.gmra.mxu0 %v91
  %v188 = vpop.f32.mrf.mxu0
  %v189 = vadd.f32 %v60, %v188
  %v190 = vpop.f32.mrf.mxu0
  %191 = vmatprep.mubr.f32.mxu0 0.0
  %192 = vmatmul.mubr.f32.gmra.mxu0 %v94
  %v193 = vpop.f32.mrf.mxu0
  %v194 = vadd.f32 %v65, %v193
  %v195 = vpop.f32.mrf.mxu0
  %196 = vmatprep.mubr.f32.mxu0 0.0
  %197 = vmatmul.mubr.f32.gmra.mxu0 %v97
  %v198 = vpop.f32.mrf.mxu0
  %v199 = vadd.f32 %v70, %v198
  %v200 = vpop.f32.mrf.mxu0
  %201 = vmatprep.mubr.f32.mxu0 0.0
  %202 = vmatmul.mubr.f32.gmra.mxu0 %v100
  %v203 = vpop.f32.mrf.mxu0
  %v204 = vadd.f32 %v75, %v203
  %v205 = vpop.f32.mrf.mxu0
  %206 = vdwg.mxu0
  %vm207 = vcmp.gt.f32.partialorder %v169, 0.0
  %vm208 = vcmp.gt.f32.partialorder %v174, 0.0
  %vm209 = vcmp.gt.f32.partialorder %v179, 0.0
  %vm210 = vcmp.gt.f32.partialorder %v184, 0.0
  %vm211 = vcmp.gt.f32.partialorder %v189, 0.0
  %vm212 = vcmp.gt.f32.partialorder %v194, 0.0
  %vm213 = vcmp.gt.f32.partialorder %v199, 0.0
  %vm214 = vcmp.gt.f32.partialorder %v204, 0.0
  %v215 = vmul.f32 %v169, 0.01
  %v216 = vmul.f32 %v174, 0.01
  %v217 = vmul.f32 %v179, 0.01
  %v218 = vmul.f32 %v184, 0.01
  %v219 = vmul.f32 %v189, 0.01
  %v220 = vmul.f32 %v194, 0.01
  %v221 = vmul.f32 %v199, 0.01
  %v222 = vmul.f32 %v204, 0.01
  %v223 = vsel %vm207, %v169, %v215
  %v224 = vsel %vm208, %v174, %v216
  %v225 = vsel %vm209, %v179, %v217
  %v226 = vsel %vm210, %v184, %v218
  %v227 = vsel %vm211, %v189, %v219
  %v228 = vsel %vm212, %v194, %v220
  %v229 = vsel %vm213, %v199, %v221
  %v230 = vsel %vm214, %v204, %v222
  %v231 = vld [vmem:[%s3] sm:$0x3]
  %v232 = vld [vmem:[%s4] sm:$0x3]
  %234 = vset.pattern.permute.xlu0 0
  %235 = vperm.xlu0 %234, %v232
  %v236 = vpop.permute.xlu0 %235
  %vm238 = vcmask 523264
  %v240 = vsel %vm238, %v231, 0
  %242 = vmatprep.subr.mxu0 0.0
  %243 = vmatpush1.msra.mxu0 0.0
  %244 = vmatprep.subr.mxu0 0.0
  %245 = vmatpush1.msra.mxu0 0.0
  %246 = vmatprep.subr.mxu0 0.0
  %247 = vmatpush1.msra.mxu0 0.0
  %248 = vmatprep.subr.mxu0 0.0
  %249 = vmatpush1.msra.mxu0 0.0
  %250 = vmatprep.subr.mxu0 0.0
  %251 = vmatpush1.msra.mxu0 0.0
  %252 = vmatprep.subr.mxu0 0.0
  %253 = vmatpush1.msra.mxu0 0.0
  %254 = vmatprep.subr.mxu0 0.0
  %255 = vmatpush1.msra.mxu0 0.0
  %256 = vmatprep.subr.mxu0 0.0
  %257 = vmatpush1.msra.mxu0 0.0
  %258 = vmatprep.subr.mxu0 0.0
  %259 = vmatpush1.msra.mxu0 %v230
  %260 = vmatprep.subr.mxu0 0.0
  %261 = vmatpush1.msra.mxu0 %v229
  %262 = vmatprep.subr.mxu0 0.0
  %263 = vmatpush1.msra.mxu0 %v228
  %264 = vmatprep.subr.mxu0 0.0
  %265 = vmatpush1.msra.mxu0 %v227
  %266 = vmatprep.subr.mxu0 0.0
  %267 = vmatpush1.msra.mxu0 %v226
  %268 = vmatprep.subr.mxu0 0.0
  %269 = vmatpush1.msra.mxu0 %v225
  %270 = vmatprep.subr.mxu0 0.0
  %271 = vmatpush1.msra.mxu0 %v224
  %272 = vmatprep.subr.mxu0 0.0
  %273 = vmatpush1.msra.mxu0 %v223
  %274 = vmatprep.subr.mxu0 0.0
  %275 = vmatpush2.msra.mxu0 0.0
  %276 = vmatprep.subr.mxu0 0.0
  %277 = vmatpush2.msra.mxu0 0.0
  %278 = vmatprep.subr.mxu0 0.0
  %279 = vmatpush2.msra.mxu0 0.0
  %280 = vmatprep.subr.mxu0 0.0
  %281 = vmatpush2.msra.mxu0 0.0
  %282 = vmatprep.subr.mxu0 0.0
  %283 = vmatpush2.msra.mxu0 0.0
  %284 = vmatprep.subr.mxu0 0.0
  %285 = vmatpush2.msra.mxu0 0.0
  %286 = vmatprep.subr.mxu0 0.0
  %287 = vmatpush2.msra.mxu0 0.0
  %288 = vmatprep.subr.mxu0 0.0
  %289 = vmatpush2.msra.mxu0 0.0
  %290 = vmatprep.subr.mxu0 0.0
  %291 = vmatpush2.msra.mxu0 0.0
  %292 = vmatprep.subr.mxu0 0.0
  %293 = vmatpush2.msra.mxu0 0.0
  %294 = vmatprep.subr.mxu0 0.0
  %295 = vmatpush2.msra.mxu0 0.0
  %296 = vmatprep.subr.mxu0 0.0
  %297 = vmatpush2.msra.mxu0 0.0
  %298 = vmatprep.subr.mxu0 0.0
  %299 = vmatpush2.msra.mxu0 0.0
  %300 = vmatprep.subr.mxu0 0.0
  %301 = vmatpush2.msra.mxu0 0.0
  %302 = vmatprep.subr.mxu0 0.0
  %303 = vmatpush2.msra.mxu0 0.0
  %304 = vmatprep.subr.mxu0 0.0
  %305 = vmatpush2.msra.mxu0 0.0
  %306 = vmatprep.mubr.f32.mxu0 0.0
  %307 = vmatmul.mubr.f32.gmra.mxu0 %v240
  %v308 = vpop.f32.mrf.mxu0
  %v309 = vadd.f32 %v236, %v308
  %v310 = vpop.f32.mrf.mxu0
  %311 = vdwg.mxu0
  %312 = vst [vmem:[%s5] sm:$0x3] %v309
  // Predicated region
  $region22: #{variational_mlp_decoder.1} parent=0 // pred_check
    _
  $region23: #{variational_mlp_decoder.1} parent=0 // pred_check_branch
    %314 = sbr.rel (0) target = $region25
  $region24: #{variational_mlp_decoder.1} parent=0 // pred_region
    _
  $region25: #{variational_mlp_decoder.1} parent=0 // pred_fallthru
    _
  // Predicated region
  $region26: #{variational_mlp_decoder.1} parent=0 // pred_check
    _
  $region27: #{variational_mlp_decoder.1} parent=0 // pred_check_branch
    %316 = sbr.rel (0) target = $region29
  $region28: #{variational_mlp_decoder.1} parent=0 // pred_region
    _
  $region29: #{variational_mlp_decoder.1} parent=0 // pred_fallthru
    _

</llo_original>
